<compile_context>
chip_gen: v5e
topology: v5e:2x2
jax: 0.10.0
libtpu: 0.0.40
codegen_flags: <defaults>
</compile_context>

<pallas_src>
import functools
import math

import jax
import jax.numpy as jnp
from jax.experimental import pallas as pl
from jax.experimental.pallas import tpu as pltpu


_LANE = 128
_SUBLANE = 8
_MAX_ROWS = 2048          # cap: 2048 rows x 128 lanes = 256K spatial elems/tile


def _round_up(a: int, b: int) -> int:
    return -(-a // b) * b


def _cdiv(a: int, b: int) -> int:
    return -(-a // b)


def _tpu_defaults():
    """Generation-aware chunk count and VMEM budgets."""
    kind = ""
    try:
        kind = jax.devices()[0].device_kind.lower()
    except Exception:
        pass
    if "v7" in kind:
        # 2 TensorCores/chip, 64 MiB physical VMEM per core.
        return {"cores": 2, "block_budget": 20 << 20, "vmem_limit": 40 << 20}
    if "v6" in kind:
        # 1 TC, 128 MiB physical VMEM (32 MiB scoped default).
        return {"cores": 1, "block_budget": 28 << 20, "vmem_limit": 56 << 20}
    if "v5e" in kind or "v5 lite" in kind or "v5lite" in kind:
        # 1 TC, 16 MiB scoped default — stay under it, no need to raise.
        return {"cores": 1, "block_budget": 10 << 20, "vmem_limit": None}
    # Unknown generation: conservative.
    return {"cores": 1, "block_budget": 8 << 20, "vmem_limit": None}


def _soft_dice_partial_kernel(x_ref, lab_ref, tp_ref, sx_ref, sy_ref, *,
                              sr, tpc, rows, needs_mask):
    """Grid = (NP parallel spatial chunks, TPC reduction tiles per chunk).

    x_ref   : (B, C, R, 128)  net-output tile (spatial on sublane+lane axes)
    lab_ref : (B, 1, R, 128)  int32 label tile
    tp/sx/sy: (1, B, C, 128)  lane-wise per-chunk accumulators (resident
                              across the TPC reduction axis)
    """
    s = pl.program_id(1)

    @pl.when(s == 0)
    def _init():
        tp_ref[...] = jnp.zeros_like(tp_ref)
        sx_ref[...] = jnp.zeros_like(sx_ref)
        sy_ref[...] = jnp.zeros_like(sy_ref)

    x = x_ref[...].astype(jnp.float32)                      # (B, C, R, 128)
    lab = lab_ref[...]                                      # (B, 1, R, 128)
    cls = jax.lax.broadcasted_iota(jnp.int32, x.shape, 1)   # class id on axis 1
    onehot = lab == cls                                     # (B, C, R, 128) bool

    if needs_mask:
        # Statically specialized: only emitted when the grid over-covers SR.
        row0 = (pl.program_id(0) * tpc + s) * rows          # logical start row
        valid = jnp.clip(sr - row0, 0, rows)                # valid rows in tile
        rmask = jax.lax.broadcasted_iota(jnp.int32, x.shape, 2) < valid
        onehot = jnp.logical_and(onehot, rmask)
        x = jnp.where(rmask, x, 0.0)

    # Sublane (row) reductions only; the lane axis stays dense in the
    # accumulators (unmasked 128-lane stores, no cross-lane XLU in the loop).
    tp_ref[...] += jnp.sum(jnp.where(onehot, x, 0.0), axis=2)[None]
    sx_ref[...] += jnp.sum(x, axis=2)[None]
    sy_ref[...] += jnp.sum(onehot.astype(jnp.float32), axis=2)[None]
    # TODO(synk): on v7x (VPU-bound) sum(y_onehot) could move to a separate
    # label-only pass, or the reductions could be offloaded to the idle MXU.


def soft_dice_loss(x, y, *, smooth=1.0):
    """x: (B, C, *spatial) float net output (used as-is: apply_nonlin=None).
    y: (B, 1, *spatial) / (B, *spatial) integer label map, or (B, C, *spatial)
    strict one-hot.  Returns (loss, (tp, fp, fn)) matching the PyTorch
    default-config forward."""
    B, C = x.shape[:2]
    spatial = tuple(x.shape[2:])
    S = math.prod(spatial)
    if not jnp.issubdtype(x.dtype, jnp.floating):
        x = x.astype(jnp.float32)

    # Integer label map (no one-hot in HBM). A one-hot gt is converted back to
    # labels (exact only for strict one-hot encodings).
    # TODO(synk): soft (non one-hot) gt with shape == x.shape is not supported.
    if y.shape == x.shape:
        labels = jnp.argmax(y, axis=1).astype(jnp.int32)
    else:
        labels = y.reshape((B,) + spatial).astype(jnp.int32)

    x_flat = x.reshape(B, C, S)
    lab_flat = labels.reshape(B, 1, S)

    # Pad (only if needed) to the next 128-lane multiple so spatial can be
    # re-laid out as (rows, 128).  Zero-pad x, pad labels with -1: exact.
    S_lane = _round_up(S, _LANE)
    if S_lane != S:
        # TODO(synk): this rare pad still copies x once in HBM; a flat-layout,
        # lane-masked tail would avoid it at the cost of the dense re-layout.
        x_flat = jnp.pad(x_flat, ((0, 0), (0, 0), (0, S_lane - S)))
        lab_flat = jnp.pad(lab_flat, ((0, 0), (0, 0), (0, S_lane - S)),
                           constant_values=-1)
    SR = S_lane // _LANE
    x4 = x_flat.reshape(B, C, SR, _LANE)
    lab4 = lab_flat.reshape(B, 1, SR, _LANE)

    # --- tile sizing (rows of 128 lanes, sized to the per-generation budget) ---
    cfg = _tpu_defaults()
    x_bytes = jnp.dtype(x.dtype).itemsize
    # Double-buffered VMEM bytes per 128-lane row: x block + label block.
    per_row = 2 * (B * C * _LANE * x_bytes + B * _LANE * 4)
    rows = (cfg["block_budget"] // per_row) // _SUBLANE * _SUBLANE
    rows = max(_SUBLANE, min(_MAX_ROWS, rows))

    if SR <= rows:
        rows = SR                      # full-extent block: no (8,128) constraint
        nb = 1
    else:
        nb = _cdiv(SR, rows)           # total row-blocks (last one may be partial)

    np_chunks = max(1, min(cfg["cores"], nb))   # parallel chunks (v7x: 2 TCs)
    tpc = _cdiv(nb, np_chunks)                  # reduction tiles per chunk
    needs_clamp = np_chunks * tpc > nb          # some grid steps are fully OOB
    needs_mask = needs_clamp or (SR % rows != 0)
    last_blk = nb - 1

    def row_block(p, s):
        blk = p * tpc + s
        return jnp.minimum(blk, last_blk) if needs_clamp else blk

    grid_spec = pltpu.PrefetchScalarGridSpec(
        num_scalar_prefetch=0,
        grid=(np_chunks, tpc),
        in_specs=[
            pl.BlockSpec((B, C, rows, _LANE),
                         lambda p, s: (0, 0, row_block(p, s), 0)),
            pl.BlockSpec((B, 1, rows, _LANE),
                         lambda p, s: (0, 0, row_block(p, s), 0)),
        ],
        out_specs=[
            pl.BlockSpec((1, B, C, _LANE), lambda p, s: (p, 0, 0, 0))
            for _ in range(3)
        ],
    )

    out_shapes = tuple(
        jax.ShapeDtypeStruct((np_chunks, B, C, _LANE), jnp.float32)
        for _ in range(3)
    )

    cp_kwargs = {"dimension_semantics": ("parallel", "arbitrary")}
    if cfg["vmem_limit"] is not None:
        cp_kwargs["vmem_limit_bytes"] = cfg["vmem_limit"]

    kernel = functools.partial(
        _soft_dice_partial_kernel,
        sr=SR, tpc=tpc, rows=rows, needs_mask=needs_mask)

    tp_p, sx_p, sy_p = pl.pallas_call(
        kernel,
        out_shape=out_shapes,
        grid_spec=grid_spec,
        compiler_params=pltpu.CompilerParams(**cp_kwargs),
    )(x4, lab4)

    # Tiny (NP, B, C, 128) -> (B, C) finalization in plain JAX.
    tp = jnp.sum(tp_p, axis=(0, 3))
    fp = jnp.sum(sx_p, axis=(0, 3)) - tp      # sum(x * (1 - y)) == sum(x) - tp
    fn = jnp.sum(sy_p, axis=(0, 3)) - tp      # sum((1 - x) * y) == sum(y) - tp
    dc = (2.0 * tp + smooth) / (2.0 * tp + fp + fn + smooth)
    loss = -jnp.mean(dc)
    return loss, (tp, fp, fn)


def _reference_soft_dice(x, y, smooth=1.0):
    """Pure-JAX reference mirroring the PyTorch forward (default config)."""
    B, C = x.shape[:2]
    axes = tuple(range(2, x.ndim))
    if y.shape == x.shape:
        y_onehot = y.astype(jnp.float32)
    else:
        labels = y.reshape((B,) + tuple(x.shape[2:])).astype(jnp.int32)
        y_onehot = jax.nn.one_hot(labels, C, axis=1, dtype=jnp.float32)
    x = x.astype(jnp.float32)
    tp = jnp.sum(x * y_onehot, axis=axes)
    fp = jnp.sum(x * (1.0 - y_onehot), axis=axes)
    fn = jnp.sum((1.0 - x) * y_onehot, axis=axes)
    dc = (2.0 * tp + smooth) / (2.0 * tp + fp + fn + smooth)
    return -jnp.mean(dc), (tp, fp, fn)


if __name__ == "__main__":
    key = jax.random.PRNGKey(0)
    kx, ky = jax.random.split(key)

    B, C, H, W = 2, 4, 16, 16
    # Softmax-like probabilities as net output (apply_nonlin=None: used as-is).
    logits = jax.random.normal(kx, (B, C, H, W), dtype=jnp.float32)
    x = jax.nn.softmax(logits, axis=1)
    # Integer label map (B, 1, H, W) in [0, C).
    y = jax.random.randint(ky, (B, 1, H, W), 0, C, dtype=jnp.int32)

    loss, (tp, fp, fn) = soft_dice_loss(x, y, smooth=1.0)
    loss = jax.block_until_ready(loss)

    ref_loss, (ref_tp, ref_fp, ref_fn) = _reference_soft_dice(x, y, smooth=1.0)
    assert jnp.allclose(loss, ref_loss, rtol=1e-5, atol=1e-5), (loss, ref_loss)
    assert jnp.allclose(tp, ref_tp, rtol=1e-5, atol=1e-4)
    assert jnp.allclose(fp, ref_fp, rtol=1e-5, atol=1e-4)
    assert jnp.allclose(fn, ref_fn, rtol=1e-5, atol=1e-4)

    print("KERNEL_OK")
</pallas_src>

<mosaic_0001>
module attributes {stable_mosaic.version = 11 : i64} {
  func.func @_soft_dice_partial_kernel(%arg0: i32, %arg1: i32, %arg2: memref<2x4x2x128xf32, #tpu.memory_space<vmem>>, %arg3: memref<2x1x2x128xi32, #tpu.memory_space<vmem>>, %arg4: memref<1x2x4x128xf32, #tpu.memory_space<vmem>>, %arg5: memref<1x2x4x128xf32, #tpu.memory_space<vmem>>, %arg6: memref<1x2x4x128xf32, #tpu.memory_space<vmem>>) attributes {dimension_semantics = [#tpu.dimension_semantics<parallel>, #tpu.dimension_semantics<arbitrary>], iteration_bounds = array<i64: 1, 1>, scalar_prefetch = 0 : i64, scratch_operands = 0 : i64, tpu.core_type = #tpu.core_type<tc>, window_params = [{transform_indices = @transform_0, window_bounds = array<i64: 2, 4, 2, 128>}, {transform_indices = @transform_1, window_bounds = array<i64: 2, 1, 2, 128>}, {transform_indices = @transform_2, window_bounds = array<i64: 1, 2, 4, 128>}, {transform_indices = @transform_3, window_bounds = array<i64: 1, 2, 4, 128>}, {transform_indices = @transform_4, window_bounds = array<i64: 1, 2, 4, 128>}]} {
    %c0_i32 = arith.constant 0 : i32
    %0 = arith.cmpi eq, %arg1, %c0_i32 : i32
    %1 = arith.extui %0 : i1 to i32
    %c0_i32_0 = arith.constant 0 : i32
    %2 = arith.cmpi ne, %1, %c0_i32_0 : i32
    scf.if %2 {
      %cst_35 = arith.constant 0.000000e+00 : f32
      %27 = vector.broadcast %cst_35 : f32 to vector<1x2x4x128xf32>
      %c0_36 = arith.constant 0 : index
      %c0_37 = arith.constant 0 : index
      %c0_38 = arith.constant 0 : index
      %c0_39 = arith.constant 0 : index
      %28 = vector.load %arg4[%c0_36, %c0_37, %c0_38, %c0_39] : memref<1x2x4x128xf32, #tpu.memory_space<vmem>>, vector<1x2x4x128xf32>
      tpu.vector_store %arg4[%c0_36, %c0_37, %c0_38, %c0_39], %27 {strides = array<i32>} : memref<1x2x4x128xf32, #tpu.memory_space<vmem>>, vector<1x2x4x128xf32>,
      %cst_40 = arith.constant 0.000000e+00 : f32
      %29 = vector.broadcast %cst_40 : f32 to vector<1x2x4x128xf32>
      %c0_41 = arith.constant 0 : index
      %c0_42 = arith.constant 0 : index
      %c0_43 = arith.constant 0 : index
      %c0_44 = arith.constant 0 : index
      %30 = vector.load %arg5[%c0_41, %c0_42, %c0_43, %c0_44] : memref<1x2x4x128xf32, #tpu.memory_space<vmem>>, vector<1x2x4x128xf32>
      tpu.vector_store %arg5[%c0_41, %c0_42, %c0_43, %c0_44], %29 {strides = array<i32>} : memref<1x2x4x128xf32, #tpu.memory_space<vmem>>, vector<1x2x4x128xf32>,
      %cst_45 = arith.constant 0.000000e+00 : f32
      %31 = vector.broadcast %cst_45 : f32 to vector<1x2x4x128xf32>
      %c0_46 = arith.constant 0 : index
      %c0_47 = arith.constant 0 : index
      %c0_48 = arith.constant 0 : index
      %c0_49 = arith.constant 0 : index
      %32 = vector.load %arg6[%c0_46, %c0_47, %c0_48, %c0_49] : memref<1x2x4x128xf32, #tpu.memory_space<vmem>>, vector<1x2x4x128xf32>
      tpu.vector_store %arg6[%c0_46, %c0_47, %c0_48, %c0_49], %31 {strides = array<i32>} : memref<1x2x4x128xf32, #tpu.memory_space<vmem>>, vector<1x2x4x128xf32>,
    } else {
    }
    %c0 = arith.constant 0 : index
    %c0_1 = arith.constant 0 : index
    %c0_2 = arith.constant 0 : index
    %c0_3 = arith.constant 0 : index
    %3 = vector.load %arg2[%c0, %c0_1, %c0_2, %c0_3] : memref<2x4x2x128xf32, #tpu.memory_space<vmem>>, vector<2x4x2x128xf32>
    %c0_4 = arith.constant 0 : index
    %c0_5 = arith.constant 0 : index
    %c0_6 = arith.constant 0 : index
    %c0_7 = arith.constant 0 : index
    %4 = vector.load %arg3[%c0_4, %c0_5, %c0_6, %c0_7] : memref<2x1x2x128xi32, #tpu.memory_space<vmem>>, vector<2x1x2x128xi32>
    %5 = tpu.iota {dimensions = array<i32: 1>} : vector<2x4x2x128xi32>
    %6 = vector.broadcast %4 : vector<2x1x2x128xi32> to vector<2x4x2x128xi32>
    %7 = arith.cmpi eq, %6, %5 : vector<2x4x2x128xi32>
    %c0_8 = arith.constant 0 : index
    %c0_9 = arith.constant 0 : index
    %c0_10 = arith.constant 0 : index
    %c0_11 = arith.constant 0 : index
    %8 = vector.load %arg4[%c0_8, %c0_9, %c0_10, %c0_11] : memref<1x2x4x128xf32, #tpu.memory_space<vmem>>, vector<1x2x4x128xf32>
    %cst = arith.constant 0.000000e+00 : f32
    %9 = vector.broadcast %cst : f32 to vector<2x4x2x128xf32>
    %10 = arith.select %7, %3, %9 : vector<2x4x2x128xi1>, vector<2x4x2x128xf32>
    %cst_12 = arith.constant dense<0.000000e+00> : vector<2x4x128xf32>
    %11 = vector.multi_reduction <add>, %10, %cst_12 [2] : vector<2x4x2x128xf32> to vector<2x4x128xf32>
    %12 = vector.shape_cast %11 : vector<2x4x128xf32> to vector<1x2x4x128xf32>
    %13 = arith.addf %8, %12 : vector<1x2x4x128xf32>
    %c0_13 = arith.constant 0 : index
    %c0_14 = arith.constant 0 : index
    %c0_15 = arith.constant 0 : index
    %c0_16 = arith.constant 0 : index
    %14 = vector.load %arg4[%c0_13, %c0_14, %c0_15, %c0_16] : memref<1x2x4x128xf32, #tpu.memory_space<vmem>>, vector<1x2x4x128xf32>
    tpu.vector_store %arg4[%c0_13, %c0_14, %c0_15, %c0_16], %13 {strides = array<i32>} : memref<1x2x4x128xf32, #tpu.memory_space<vmem>>, vector<1x2x4x128xf32>,
    %c0_17 = arith.constant 0 : index
    %c0_18 = arith.constant 0 : index
    %c0_19 = arith.constant 0 : index
    %c0_20 = arith.constant 0 : index
    %15 = vector.load %arg5[%c0_17, %c0_18, %c0_19, %c0_20] : memref<1x2x4x128xf32, #tpu.memory_space<vmem>>, vector<1x2x4x128xf32>
    %cst_21 = arith.constant dense<0.000000e+00> : vector<2x4x128xf32>
    %16 = vector.multi_reduction <add>, %3, %cst_21 [2] : vector<2x4x2x128xf32> to vector<2x4x128xf32>
    %17 = vector.shape_cast %16 : vector<2x4x128xf32> to vector<1x2x4x128xf32>
    %18 = arith.addf %15, %17 : vector<1x2x4x128xf32>
    %c0_22 = arith.constant 0 : index
    %c0_23 = arith.constant 0 : index
    %c0_24 = arith.constant 0 : index
    %c0_25 = arith.constant 0 : index
    %19 = vector.load %arg5[%c0_22, %c0_23, %c0_24, %c0_25] : memref<1x2x4x128xf32, #tpu.memory_space<vmem>>, vector<1x2x4x128xf32>
    tpu.vector_store %arg5[%c0_22, %c0_23, %c0_24, %c0_25], %18 {strides = array<i32>} : memref<1x2x4x128xf32, #tpu.memory_space<vmem>>, vector<1x2x4x128xf32>,
    %c0_26 = arith.constant 0 : index
    %c0_27 = arith.constant 0 : index
    %c0_28 = arith.constant 0 : index
    %c0_29 = arith.constant 0 : index
    %20 = vector.load %arg6[%c0_26, %c0_27, %c0_28, %c0_29] : memref<1x2x4x128xf32, #tpu.memory_space<vmem>>, vector<1x2x4x128xf32>
    %21 = arith.extui %7 : vector<2x4x2x128xi1> to vector<2x4x2x128xi32>
    %22 = arith.sitofp %21 : vector<2x4x2x128xi32> to vector<2x4x2x128xf32>
    %cst_30 = arith.constant dense<0.000000e+00> : vector<2x4x128xf32>
    %23 = vector.multi_reduction <add>, %22, %cst_30 [2] : vector<2x4x2x128xf32> to vector<2x4x128xf32>
    %24 = vector.shape_cast %23 : vector<2x4x128xf32> to vector<1x2x4x128xf32>
    %25 = arith.addf %20, %24 : vector<1x2x4x128xf32>
    %c0_31 = arith.constant 0 : index
    %c0_32 = arith.constant 0 : index
    %c0_33 = arith.constant 0 : index
    %c0_34 = arith.constant 0 : index
    %26 = vector.load %arg6[%c0_31, %c0_32, %c0_33, %c0_34] : memref<1x2x4x128xf32, #tpu.memory_space<vmem>>, vector<1x2x4x128xf32>
    tpu.vector_store %arg6[%c0_31, %c0_32, %c0_33, %c0_34], %25 {strides = array<i32>} : memref<1x2x4x128xf32, #tpu.memory_space<vmem>>, vector<1x2x4x128xf32>,
    return
  }
  func.func @transform_0(%arg0: i32, %arg1: i32) -> (i32, i32, i32, i32) {
    %c1_i32 = arith.constant 1 : i32
    %0 = arith.muli %arg0, %c1_i32 : i32
    %1 = arith.addi %0, %arg1 : i32
    %c0_i32 = arith.constant 0 : i32
    %c0_i32_0 = arith.constant 0 : i32
    %c0_i32_1 = arith.constant 0 : i32
    %c0_i32_2 = arith.constant 0 : i32
    return %c0_i32, %c0_i32_0, %1, %c0_i32_1 : i32, i32, i32, i32
  }
  func.func @transform_1(%arg0: i32, %arg1: i32) -> (i32, i32, i32, i32) {
    %c1_i32 = arith.constant 1 : i32
    %0 = arith.muli %arg0, %c1_i32 : i32
    %1 = arith.addi %0, %arg1 : i32
    %c0_i32 = arith.constant 0 : i32
    %c0_i32_0 = arith.constant 0 : i32
    %c0_i32_1 = arith.constant 0 : i32
    %c0_i32_2 = arith.constant 0 : i32
    return %c0_i32, %c0_i32_0, %1, %c0_i32_1 : i32, i32, i32, i32
  }
  func.func @transform_2(%arg0: i32, %arg1: i32) -> (i32, i32, i32, i32) {
    %c0_i32 = arith.constant 0 : i32
    %c0_i32_0 = arith.constant 0 : i32
    %c0_i32_1 = arith.constant 0 : i32
    %c0_i32_2 = arith.constant 0 : i32
    return %arg0, %c0_i32, %c0_i32_0, %c0_i32_1 : i32, i32, i32, i32
  }
  func.func @transform_3(%arg0: i32, %arg1: i32) -> (i32, i32, i32, i32) {
    %c0_i32 = arith.constant 0 : i32
    %c0_i32_0 = arith.constant 0 : i32
    %c0_i32_1 = arith.constant 0 : i32
    %c0_i32_2 = arith.constant 0 : i32
    return %arg0, %c0_i32, %c0_i32_0, %c0_i32_1 : i32, i32, i32, i32
  }
  func.func @transform_4(%arg0: i32, %arg1: i32) -> (i32, i32, i32, i32) {
    %c0_i32 = arith.constant 0 : i32
    %c0_i32_0 = arith.constant 0 : i32
    %c0_i32_1 = arith.constant 0 : i32
    %c0_i32_2 = arith.constant 0 : i32
    return %arg0, %c0_i32, %c0_i32_0, %c0_i32_1 : i32, i32, i32, i32
  }
}

</mosaic_0001>

<llo_original>
// kernel: tpu_custom_call.1
$region0: #{tpu_custom_call.1}
  #allocation0 [shape = 'u32[]', space=smem, size = 0x4, offset = 0x4, fixed_abs, tag = 'smem constant byte address 0x4 - core index']
  #allocation1 [shape = 'u32[72,128]{1,0:T(1,128)}', space=vmem, size = 0x9000, scoped, tag = 'internal scratch']
  %s0 = inlined_call_operand.hbm [shape: f32[2,4,2,128], index: 0, kind: input, shape index: {}]
  %s1 = inlined_call_operand.hbm [shape: s32[2,1,2,128], index: 1, kind: input, shape index: {}]
  %s2 = inlined_call_operand.hbm [shape: f32[1,2,4,128], index: 2, kind: output, shape index: {0}]
  %s3 = inlined_call_operand.hbm [shape: f32[1,2,4,128], index: 3, kind: output, shape index: {1}]
  %s4 = inlined_call_operand.hbm [shape: f32[1,2,4,128], index: 4, kind: output, shape index: {2}]
  %5 = xla_tuple %s2, %s3, %s4
  %s6 = sld [smem:[#allocation0]]
  $region46: #{tpu_custom_call.1} parent=0
    _
  %s8 = ssub.s32 1, %s6
  %s9 = scalar_select 0, %s8, %s6
  $region1: #{tpu_custom_call.1} parent=0
    #allocation2 [shape = 'u8[8192]{0}', space=vmem, size = 0x2000, scoped, tag = 'input window, operand 0, single buffered']
    #allocation3 [shape = 's32[1]{0}', space=sflag, size = 0x4, scoped, tag = 'scoped memory for tpu_custom_call.1']
    #allocation4 [shape = 's32[1]{0}', space=sflag, size = 0x4, scoped, tag = 'scoped memory for tpu_custom_call.1']
    #allocation5 [shape = 'u8[2048]{0}', space=vmem, size = 0x800, scoped, tag = 'input window, operand 1, single buffered']
    #allocation6 [shape = 's32[1]{0}', space=sflag, size = 0x4, scoped, tag = 'scoped memory for tpu_custom_call.1']
    #allocation7 [shape = 'u8[4096]{0}', space=vmem, size = 0x1000, scoped, tag = 'output window, operand 0, single buffered']
    #allocation8 [shape = 'u8[4096]{0}', space=vmem, size = 0x1000, scoped, tag = 'output window, operand 1, single buffered']
    #allocation9 [shape = 's32[1]{0}', space=sflag, size = 0x4, scoped, tag = 'scoped memory for tpu_custom_call.1']
    #allocation10 [shape = 'u8[4096]{0}', space=vmem, size = 0x1000, scoped, tag = 'output window, operand 2, single buffered']
    %10 = vsyncpa [#allocation3], 0
    %11 = vsyncpa [#allocation6], 0
    %12 = vsyncpa [#allocation4], 0
    %13 = vsyncpa [#allocation9], 0
    // Predicated region
    $region2: #{tpu_custom_call.1} parent=1 // pred_check
      _
    $region3: #{tpu_custom_call.1} parent=1 // pred_check_branch
      %15 = sbr.rel (0) target = $region5
    $region4: #{tpu_custom_call.1} parent=1 // pred_region
      %s16 = sadd.s32 0, 0
      %18 = vsyncadd [#allocation3], 0
      %s19 = smul.addr %s16, 2
      %s20 = scalar_lea.hbm %s0, %s19
      %s21 = sshll.u32 %s20, 4
      %s22 = int_to_ptr.hbm [resolvable:$true] %s21
      %s23 = sshll.u32 [#allocation2], 4
      %s24 = int_to_ptr.vmem [resolvable:$true] %s23
      %29 = dma.hbm_to_vmem [thread:$0]  %s22, 256, %s24, [#allocation3], 32, 32, 2
    $region5: #{tpu_custom_call.1} parent=1 // pred_fallthru
      _
    // Predicated region
    $region6: #{tpu_custom_call.1} parent=1 // pred_check
      _
    $region7: #{tpu_custom_call.1} parent=1 // pred_check_branch
      %31 = sbr.rel (0) target = $region9
    $region8: #{tpu_custom_call.1} parent=1 // pred_region
      %s32 = sadd.s32 0, 0
      %34 = vsyncadd [#allocation6], 0
      %s35 = smul.addr %s32, 2
      %s36 = scalar_lea.hbm %s1, %s35
      %s37 = sshll.u32 %s36, 4
      %s38 = int_to_ptr.hbm [resolvable:$true] %s37
      %s39 = sshll.u32 [#allocation5], 4
      %s40 = int_to_ptr.vmem [resolvable:$true] %s39
      %45 = dma.hbm_to_vmem [thread:$0]  %s38, 64, %s40, [#allocation6], 32, 32, 2
    $region9: #{tpu_custom_call.1} parent=1 // pred_fallthru
      _
    // Predicated region
    $region10: #{tpu_custom_call.1} parent=1 // pred_check
      _
    $region11: #{tpu_custom_call.1} parent=1 // pred_check_branch
      %47 = sbr.rel (0) target = $region13
    $region12: #{tpu_custom_call.1} parent=1 // pred_region
      %49 = dma.done [#allocation3], 256
    $region13: #{tpu_custom_call.1} parent=1 // pred_fallthru
      _
    // Predicated region
    $region14: #{tpu_custom_call.1} parent=1 // pred_check
      _
    $region15: #{tpu_custom_call.1} parent=1 // pred_check_branch
      %51 = sbr.rel (0) target = $region17
    $region16: #{tpu_custom_call.1} parent=1 // pred_region
      %53 = dma.done [#allocation6], 64
    $region17: #{tpu_custom_call.1} parent=1 // pred_fallthru
      _
    %s54 = sadd.s32 0, 0
    %s55 = sadd.s32 0, 0
    %p56 = scmp.eq.s32.totalorder 0, 0
    // Predicated region
    $region18: #{tpu_custom_call.1} parent=1 // pred_check
      %p57 = pneg %p56
    $region19: #{tpu_custom_call.1} parent=1 // pred_check_branch
      %59 = sbr.rel (%p57) target = $region21
    $region20: #{tpu_custom_call.1} parent=1 // pred_region
      %60 = vst [vmem:[#allocation7] sm:$0xf] 0.0
      %61 = vst [vmem:[#allocation7 + $0x4] sm:$0xf] 0.0
      %62 = vst [vmem:[#allocation8] sm:$0xf] 0.0
      %63 = vst [vmem:[#allocation8 + $0x4] sm:$0xf] 0.0
      %64 = vst [vmem:[#allocation10] sm:$0xf] 0.0
      %65 = vst [vmem:[#allocation10 + $0x4] sm:$0xf] 0.0
    $region21: #{tpu_custom_call.1} parent=1 // pred_fallthru
      _
    %v66 = vld [vmem:[#allocation2] sm:$0x3]
    %v67 = vld [vmem:[#allocation2 + $0x2] sm:$0x3]
    %v68 = vld [vmem:[#allocation2 + $0x4] sm:$0x3]
    %v69 = vld [vmem:[#allocation2 + $0x6] sm:$0x3]
    %v70 = vld [vmem:[#allocation2 + $0x8] sm:$0x3]
    %v71 = vld [vmem:[#allocation2 + $0xa] sm:$0x3]
    %v72 = vld [vmem:[#allocation2 + $0xc] sm:$0x3]
    %v73 = vld [vmem:[#allocation2 + $0xe] sm:$0x3]
    %v74 = vld [vmem:[#allocation5] sm:$0x3]
    %v75 = vld [vmem:[#allocation5 + $0x2] sm:$0x3]
    %vm76 = vcmp.eq.s32.totalorder %v74, 0
    %vm77 = vcmp.eq.s32.totalorder %v74, 1
    %vm78 = vcmp.eq.s32.totalorder %v74, 2
    %vm79 = vcmp.eq.s32.totalorder %v74, 3
    %vm80 = vcmp.eq.s32.totalorder %v75, 0
    %vm81 = vcmp.eq.s32.totalorder %v75, 1
    %vm82 = vcmp.eq.s32.totalorder %v75, 2
    %vm83 = vcmp.eq.s32.totalorder %v75, 3
    %v84 = vld [vmem:[#allocation7] sm:$0xf]
    %v85 = vld [vmem:[#allocation7 + $0x4] sm:$0xf]
    %v86 = vsel %vm76, %v66, 0.0
    %v87 = vsel %vm77, %v67, 0.0
    %v88 = vsel %vm78, %v68, 0.0
    %v89 = vsel %vm79, %v69, 0.0
    %v90 = vsel %vm80, %v70, 0.0
    %v91 = vsel %vm81, %v71, 0.0
    %v92 = vsel %vm82, %v72, 0.0
    %v93 = vsel %vm83, %v73, 0.0
    %vm94 = vcmask 1041408
    %v95 = vsel %vm94, %v86, 0.0
    %v96 = vrot.slane %v95, 4
    %v97 = vadd.f32 %v95, %v96
    %v98 = vrot.slane %v97, 2
    %v99 = vadd.f32 %v97, %v98
    %v100 = vrot.slane %v99, 1
    %v101 = vadd.f32 %v99, %v100
    %v102 = vsel %vm94, %v87, 0.0
    %v103 = vrot.slane %v102, 4
    %v104 = vadd.f32 %v102, %v103
    %v105 = vrot.slane %v104, 2
    %v106 = vadd.f32 %v104, %v105
    %v107 = vrot.slane %v106, 1
    %v108 = vadd.f32 %v106, %v107
    %v109 = vsel %vm94, %v88, 0.0
    %v110 = vrot.slane %v109, 4
    %v111 = vadd.f32 %v109, %v110
    %v112 = vrot.slane %v111, 2
    %v113 = vadd.f32 %v111, %v112
    %v114 = vrot.slane %v113, 1
    %v115 = vadd.f32 %v113, %v114
    %v116 = vsel %vm94, %v89, 0.0
    %v117 = vrot.slane %v116, 4
    %v118 = vadd.f32 %v116, %v117
    %v119 = vrot.slane %v118, 2
    %v120 = vadd.f32 %v118, %v119
    %v121 = vrot.slane %v120, 1
    %v122 = vadd.f32 %v120, %v121
    %v123 = vsel %vm94, %v90, 0.0
    %v124 = vrot.slane %v123, 4
    %v125 = vadd.f32 %v123, %v124
    %v126 = vrot.slane %v125, 2
    %v127 = vadd.f32 %v125, %v126
    %v128 = vrot.slane %v127, 1
    %v129 = vadd.f32 %v127, %v128
    %v130 = vsel %vm94, %v91, 0.0
    %v131 = vrot.slane %v130, 4
    %v132 = vadd.f32 %v130, %v131
    %v133 = vrot.slane %v132, 2
    %v134 = vadd.f32 %v132, %v133
    %v135 = vrot.slane %v134, 1
    %v136 = vadd.f32 %v134, %v135
    %v137 = vsel %vm94, %v92, 0.0
    %v138 = vrot.slane %v137, 4
    %v139 = vadd.f32 %v137, %v138
    %v140 = vrot.slane %v139, 2
    %v141 = vadd.f32 %v139, %v140
    %v142 = vrot.slane %v141, 1
    %v143 = vadd.f32 %v141, %v142
    %v144 = vsel %vm94, %v93, 0.0
    %v145 = vrot.slane %v144, 4
    %v146 = vadd.f32 %v144, %v145
    %v147 = vrot.slane %v146, 2
    %v148 = vadd.f32 %v146, %v147
    %v149 = vrot.slane %v148, 1
    %v150 = vadd.f32 %v148, %v149
    %vm159 = vcmask 1041409
    %v160 = vsel %vm159, %v108, %v101
    %vm161 = vcmask 1042434
    %v162 = vsel %vm161, %v115, %v160
    %vm163 = vcmask 1043459
    %v164 = vsel %vm163, %v122, %v162
    %v165 = vsel %vm159, %v136, %v129
    %v166 = vsel %vm161, %v143, %v165
    %v167 = vsel %vm163, %v150, %v166
    %v170 = vadd.f32 %v84, %v164
    %v171 = vadd.f32 %v85, %v167
    %172 = vst [vmem:[#allocation7] sm:$0xf] %v170
    %173 = vst [vmem:[#allocation7 + $0x4] sm:$0xf] %v171
    %v174 = vld [vmem:[#allocation8] sm:$0xf]
    %v175 = vld [vmem:[#allocation8 + $0x4] sm:$0xf]
    %v176 = vsel %vm94, %v66, 0.0
    %v177 = vrot.slane %v176, 4
    %v178 = vadd.f32 %v176, %v177
    %v179 = vrot.slane %v178, 2
    %v180 = vadd.f32 %v178, %v179
    %v181 = vrot.slane %v180, 1
    %v182 = vadd.f32 %v180, %v181
    %v183 = vsel %vm94, %v67, 0.0
    %v184 = vrot.slane %v183, 4
    %v185 = vadd.f32 %v183, %v184
    %v186 = vrot.slane %v185, 2
    %v187 = vadd.f32 %v185, %v186
    %v188 = vrot.slane %v187, 1
    %v189 = vadd.f32 %v187, %v188
    %v190 = vsel %vm94, %v68, 0.0
    %v191 = vrot.slane %v190, 4
    %v192 = vadd.f32 %v190, %v191
    %v193 = vrot.slane %v192, 2
    %v194 = vadd.f32 %v192, %v193
    %v195 = vrot.slane %v194, 1
    %v196 = vadd.f32 %v194, %v195
    %v197 = vsel %vm94, %v69, 0.0
    %v198 = vrot.slane %v197, 4
    %v199 = vadd.f32 %v197, %v198
    %v200 = vrot.slane %v199, 2
    %v201 = vadd.f32 %v199, %v200
    %v202 = vrot.slane %v201, 1
    %v203 = vadd.f32 %v201, %v202
    %v204 = vsel %vm94, %v70, 0.0
    %v205 = vrot.slane %v204, 4
    %v206 = vadd.f32 %v204, %v205
    %v207 = vrot.slane %v206, 2
    %v208 = vadd.f32 %v206, %v207
    %v209 = vrot.slane %v208, 1
    %v210 = vadd.f32 %v208, %v209
    %v211 = vsel %vm94, %v71, 0.0
    %v212 = vrot.slane %v211, 4
    %v213 = vadd.f32 %v211, %v212
    %v214 = vrot.slane %v213, 2
    %v215 = vadd.f32 %v213, %v214
    %v216 = vrot.slane %v215, 1
    %v217 = vadd.f32 %v215, %v216
    %v218 = vsel %vm94, %v72, 0.0
    %v219 = vrot.slane %v218, 4
    %v220 = vadd.f32 %v218, %v219
    %v221 = vrot.slane %v220, 2
    %v222 = vadd.f32 %v220, %v221
    %v223 = vrot.slane %v222, 1
    %v224 = vadd.f32 %v222, %v223
    %v225 = vsel %vm94, %v73, 0.0
    %v226 = vrot.slane %v225, 4
    %v227 = vadd.f32 %v225, %v226
    %v228 = vrot.slane %v227, 2
    %v229 = vadd.f32 %v227, %v228
    %v230 = vrot.slane %v229, 1
    %v231 = vadd.f32 %v229, %v230
    %v240 = vsel %vm159, %v189, %v182
    %v241 = vsel %vm161, %v196, %v240
    %v242 = vsel %vm163, %v203, %v241
    %v243 = vsel %vm159, %v217, %v210
    %v244 = vsel %vm161, %v224, %v243
    %v245 = vsel %vm163, %v231, %v244
    %v248 = vadd.f32 %v174, %v242
    %v249 = vadd.f32 %v175, %v245
    %250 = vst [vmem:[#allocation8] sm:$0xf] %v248
    %251 = vst [vmem:[#allocation8 + $0x4] sm:$0xf] %v249
    %v252 = vld [vmem:[#allocation10] sm:$0xf]
    %v253 = vld [vmem:[#allocation10 + $0x4] sm:$0xf]
    %v254 = vsel %vm76, 1, 0
    %v255 = vsel %vm77, 1, 0
    %v256 = vsel %vm78, 1, 0
    %v257 = vsel %vm79, 1, 0
    %v258 = vsel %vm80, 1, 0
    %v259 = vsel %vm81, 1, 0
    %v260 = vsel %vm82, 1, 0
    %v261 = vsel %vm83, 1, 0
    %v262 = vcvt.s32.f32 %v254
    %v263 = vcvt.s32.f32 %v255
    %v264 = vcvt.s32.f32 %v256
    %v265 = vcvt.s32.f32 %v257
    %v266 = vcvt.s32.f32 %v258
    %v267 = vcvt.s32.f32 %v259
    %v268 = vcvt.s32.f32 %v260
    %v269 = vcvt.s32.f32 %v261
    %v270 = vsel %vm94, %v262, 0.0
    %v271 = vrot.slane %v270, 4
    %v272 = vadd.f32 %v270, %v271
    %v273 = vrot.slane %v272, 2
    %v274 = vadd.f32 %v272, %v273
    %v275 = vrot.slane %v274, 1
    %v276 = vadd.f32 %v274, %v275
    %v277 = vsel %vm94, %v263, 0.0
    %v278 = vrot.slane %v277, 4
    %v279 = vadd.f32 %v277, %v278
    %v280 = vrot.slane %v279, 2
    %v281 = vadd.f32 %v279, %v280
    %v282 = vrot.slane %v281, 1
    %v283 = vadd.f32 %v281, %v282
    %v284 = vsel %vm94, %v264, 0.0
    %v285 = vrot.slane %v284, 4
    %v286 = vadd.f32 %v284, %v285
    %v287 = vrot.slane %v286, 2
    %v288 = vadd.f32 %v286, %v287
    %v289 = vrot.slane %v288, 1
    %v290 = vadd.f32 %v288, %v289
    %v291 = vsel %vm94, %v265, 0.0
    %v292 = vrot.slane %v291, 4
    %v293 = vadd.f32 %v291, %v292
    %v294 = vrot.slane %v293, 2
    %v295 = vadd.f32 %v293, %v294
    %v296 = vrot.slane %v295, 1
    %v297 = vadd.f32 %v295, %v296
    %v298 = vsel %vm94, %v266, 0.0
    %v299 = vrot.slane %v298, 4
    %v300 = vadd.f32 %v298, %v299
    %v301 = vrot.slane %v300, 2
    %v302 = vadd.f32 %v300, %v301
    %v303 = vrot.slane %v302, 1
    %v304 = vadd.f32 %v302, %v303
    %v305 = vsel %vm94, %v267, 0.0
    %v306 = vrot.slane %v305, 4
    %v307 = vadd.f32 %v305, %v306
    %v308 = vrot.slane %v307, 2
    %v309 = vadd.f32 %v307, %v308
    %v310 = vrot.slane %v309, 1
    %v311 = vadd.f32 %v309, %v310
    %v312 = vsel %vm94, %v268, 0.0
    %v313 = vrot.slane %v312, 4
    %v314 = vadd.f32 %v312, %v313
    %v315 = vrot.slane %v314, 2
    %v316 = vadd.f32 %v314, %v315
    %v317 = vrot.slane %v316, 1
    %v318 = vadd.f32 %v316, %v317
    %v319 = vsel %vm94, %v269, 0.0
    %v320 = vrot.slane %v319, 4
    %v321 = vadd.f32 %v319, %v320
    %v322 = vrot.slane %v321, 2
    %v323 = vadd.f32 %v321, %v322
    %v324 = vrot.slane %v323, 1
    %v325 = vadd.f32 %v323, %v324
    %v334 = vsel %vm159, %v283, %v276
    %v335 = vsel %vm161, %v290, %v334
    %v336 = vsel %vm163, %v297, %v335
    %v337 = vsel %vm159, %v311, %v304
    %v338 = vsel %vm161, %v318, %v337
    %v339 = vsel %vm163, %v325, %v338
    %v342 = vadd.f32 %v252, %v336
    %v343 = vadd.f32 %v253, %v339
    %344 = vst [vmem:[#allocation10] sm:$0xf] %v342
    %345 = vst [vmem:[#allocation10 + $0x4] sm:$0xf] %v343
    // Predicated region
    $region22: #{tpu_custom_call.1} parent=1 // pred_check
      _
    $region23: #{tpu_custom_call.1} parent=1 // pred_check_branch
      %347 = sbr.rel (0) target = $region25
    $region24: #{tpu_custom_call.1} parent=1 // pred_region
      %349 = vsyncadd [#allocation4], 0
      %s350 = sshll.u32 [#allocation7], 4
      %s351 = int_to_ptr.vmem [resolvable:$true] %s350
      %s352 = sshll.u32 %s2, 4
      %s353 = int_to_ptr.hbm [resolvable:$true] %s352
      %358 = dma.vmem_to_hbm [thread:$0]  %s351, 128, %s353, [#allocation4], 64, 64, 4
    $region25: #{tpu_custom_call.1} parent=1 // pred_fallthru
      _
    // Predicated region
    $region26: #{tpu_custom_call.1} parent=1 // pred_check
      _
    $region27: #{tpu_custom_call.1} parent=1 // pred_check_branch
      %360 = sbr.rel (0) target = $region29
    $region28: #{tpu_custom_call.1} parent=1 // pred_region
      %362 = vsyncadd [#allocation9], 0
      %s363 = sshll.u32 [#allocation8], 4
      %s364 = int_to_ptr.vmem [resolvable:$true] %s363
      %s365 = sshll.u32 %s3, 4
      %s366 = int_to_ptr.hbm [resolvable:$true] %s365
      %371 = dma.vmem_to_hbm [thread:$0]  %s364, 128, %s366, [#allocation9], 64, 64, 4
    $region29: #{tpu_custom_call.1} parent=1 // pred_fallthru
      _
    // Predicated region
    $region30: #{tpu_custom_call.1} parent=1 // pred_check
      _
    $region31: #{tpu_custom_call.1} parent=1 // pred_check_branch
      %373 = sbr.rel (0) target = $region33
    $region32: #{tpu_custom_call.1} parent=1 // pred_region
      %375 = vsyncadd [#allocation9], 0
      %s376 = sshll.u32 [#allocation10], 4
      %s377 = int_to_ptr.vmem [resolvable:$true] %s376
      %s378 = sshll.u32 %s4, 4
      %s379 = int_to_ptr.hbm [resolvable:$true] %s378
      %384 = dma.vmem_to_hbm [thread:$0]  %s377, 128, %s379, [#allocation9], 64, 64, 4
    $region33: #{tpu_custom_call.1} parent=1 // pred_fallthru
      _
    // Predicated region
    $region34: #{tpu_custom_call.1} parent=1 // pred_check
      _
    $region35: #{tpu_custom_call.1} parent=1 // pred_check_branch
      %386 = sbr.rel (0) target = $region37
    $region36: #{tpu_custom_call.1} parent=1 // pred_region
      %388 = dma.done [#allocation4], 128
    $region37: #{tpu_custom_call.1} parent=1 // pred_fallthru
      _
    // Predicated region
    $region38: #{tpu_custom_call.1} parent=1 // pred_check
      _
    $region39: #{tpu_custom_call.1} parent=1 // pred_check_branch
      %390 = sbr.rel (0) target = $region41
    $region40: #{tpu_custom_call.1} parent=1 // pred_region
      %392 = dma.done [#allocation9], 128
    $region41: #{tpu_custom_call.1} parent=1 // pred_fallthru
      _
    // Predicated region
    $region42: #{tpu_custom_call.1} parent=1 // pred_check
      _
    $region43: #{tpu_custom_call.1} parent=1 // pred_check_branch
      %394 = sbr.rel (0) target = $region45
    $region44: #{tpu_custom_call.1} parent=1 // pred_region
      %396 = dma.done [#allocation9], 128
    $region45: #{tpu_custom_call.1} parent=1 // pred_fallthru
      _
    %397 = vsyncpa [#allocation3], 1
    %398 = vsyncpa [#allocation6], 1
    %399 = vsyncpa [#allocation4], 1
    %400 = vsyncpa [#allocation9], 1

</llo_original>
